<compile_context>
chip_gen: v7x
topology: tpu7x:2x2x1
jax: 0.10.0
libtpu: 0.0.40
codegen_flags: <defaults>
</compile_context>

<pallas_src>
import functools

import numpy as np
import jax
import jax.numpy as jnp
from jax.experimental import pallas as pl
from jax.experimental.pallas import tpu as pltpu


def _dwconv_kernel(x_ref, w_ref, b_ref, o_ref, *, ksize, use_act, neg_slope):
    """One grid step = one tile of N*C planes (lane axis).

    x_ref: (H+2p, W+2p, TILE_B)   padded input planes
    w_ref: (K*K,    TILE_B)       per-plane tap weights
    b_ref: (1,      TILE_B)       per-plane bias
    o_ref: (H_out, W_out, TILE_B) output planes
    """
    h_out, w_out, _ = o_ref.shape
    acc = jnp.zeros(o_ref.shape, jnp.float32)
    # Static K*K tap loop: shifted VMEM slices, lane-broadcast weight, VPU MAC.
    for kh in range(ksize):
        for kw in range(ksize):
            tap = x_ref[kh:kh + h_out, kw:kw + w_out, :].astype(jnp.float32)
            wt = w_ref[kh * ksize + kw, :].astype(jnp.float32)
            acc = acc + tap * wt[None, None, :]
    acc = acc + b_ref[0, :].astype(jnp.float32)[None, None, :]
    if use_act:  # LeakyReLU fused (module's use_activation=True path)
        acc = jnp.where(acc >= 0.0, acc, neg_slope * acc)
    o_ref[...] = acc.astype(o_ref.dtype)


def depthwise_conv_pallas(x, weight, bias=None, *, stride=1, padding=1,
                          use_activation=False, negative_slope=0.01,
                          bn_params=None, bn_eps=1e-5):
    """Forward of `depthwise_conv` for NCHW input.

    x:      (N, C, H, W)
    weight: (C, 1, K, K)   (PyTorch depthwise Conv2d layout, groups=C)
    bias:   (C,) or None
    bn_params: optional (gamma, beta, running_mean, running_var) -> folded (inference BN)
    """
    N, C, H, W = x.shape
    assert weight.shape[0] == C and weight.shape[1] == 1
    K = weight.shape[-1]
    if stride != 1:
        # TODO(synk): stride > 1 depthwise path not implemented in the Pallas kernel.
        raise NotImplementedError("Pallas depthwise kernel implements stride=1.")

    if bias is None:
        bias = jnp.zeros((C,), x.dtype)
    if bn_params is not None:  # inference-mode BN folded into weight/bias (wrapper glue)
        gamma, beta, mean, var = bn_params
        scale = gamma * jax.lax.rsqrt(var + bn_eps)
        weight = weight * scale[:, None, None, None]
        bias = (bias - mean) * scale + beta

    Hp, Wp = H + 2 * padding, W + 2 * padding
    Ho, Wo = Hp - K + 1, Wp - K + 1
    B = N * C

    # ---- glue: planes-on-lanes layout; single padded copy of the input ----
    xt = jnp.transpose(x, (2, 3, 0, 1)).reshape(H, W, B)               # (H, W, N*C), b = n*C + c
    xp = jnp.pad(xt, ((padding, padding), (padding, padding), (0, 0)))  # (H+2p, W+2p, N*C)
    w_planes = jnp.tile(weight.reshape(C, K * K).T, (1, N))             # (K*K, N*C)
    b_planes = jnp.tile(bias, (N,)).reshape(1, B)                       # (1,   N*C)

    # Tile only the plane (lane) axis: lane-dense when tile_b is a multiple of 128,
    # bounded VMEM for large N*C, and a parallel axis for v7x's 2 TensorCores.
    tile_b = B if B <= 512 else 512
    grid = (pl.cdiv(B, tile_b),)

    kernel = functools.partial(_dwconv_kernel, ksize=K,
                               use_act=use_activation, neg_slope=negative_slope)

    out = pl.pallas_call(
        kernel,
        out_shape=jax.ShapeDtypeStruct((Ho, Wo, B), x.dtype),
        grid=grid,
        in_specs=[
            pl.BlockSpec((Hp, Wp, tile_b), lambda i: (0, 0, i)),   # padded input tile
            pl.BlockSpec((K * K, tile_b), lambda i: (0, i)),       # per-plane tap weights
            pl.BlockSpec((1, tile_b), lambda i: (0, i)),           # per-plane bias
        ],
        out_specs=pl.BlockSpec((Ho, Wo, tile_b), lambda i: (0, 0, i)),
        compiler_params=pltpu.CompilerParams(
            dimension_semantics=("parallel",),
            vmem_limit_bytes=32 * 1024 * 1024,
        ),
    )(xp, w_planes, b_planes)

    # ---- glue: back to PyTorch NCHW ----
    return jnp.transpose(out.reshape(Ho, Wo, N, C), (2, 3, 0, 1))


def _reference_depthwise_conv(x, weight, bias, stride, padding):
    """Independent numpy reference straight from the Conv2d(groups=C) definition."""
    x = np.asarray(x, np.float32)
    w = np.asarray(weight, np.float32)
    b = np.asarray(bias, np.float32)
    N, C, H, W = x.shape
    K = w.shape[-1]
    xp = np.pad(x, ((0, 0), (0, 0), (padding, padding), (padding, padding)))
    Ho = (H + 2 * padding - K) // stride + 1
    Wo = (W + 2 * padding - K) // stride + 1
    y = np.zeros((N, C, Ho, Wo), np.float32)
    for kh in range(K):
        for kw in range(K):
            xs = xp[:, :, kh:kh + stride * Ho:stride, kw:kw + stride * Wo:stride]
            y += xs * w[None, :, 0, kh, kw][..., None, None]
    return y + b[None, :, None, None]


if __name__ == "__main__":
    key = jax.random.PRNGKey(0)
    kx, kw_, kb_ = jax.random.split(key, 3)

    # Small shapes consistent with the module: batch=2, in_channels=4, spatial=16,
    # kernel_size=3, stride=1, padding=1 (use_bn=False, use_activation=False defaults).
    N, C, H, W = 2, 4, 16, 16
    K, stride, padding = 3, 1, 1

    x = jax.random.normal(kx, (N, C, H, W), jnp.float32)
    weight = jax.random.normal(kw_, (C, 1, K, K), jnp.float32) * 0.2
    bias = jax.random.normal(kb_, (C,), jnp.float32) * 0.1

    # Default module path: depthwise conv + bias (bn/activation are identity).
    y = depthwise_conv_pallas(x, weight, bias, stride=stride, padding=padding)
    y = jax.block_until_ready(y)
    ref = _reference_depthwise_conv(x, weight, bias, stride, padding)
    np.testing.assert_allclose(np.asarray(y), ref, rtol=1e-5, atol=1e-5)

    # use_activation=True path (fused LeakyReLU in the kernel).
    y2 = depthwise_conv_pallas(x, weight, bias, stride=stride, padding=padding,
                               use_activation=True)
    y2 = jax.block_until_ready(y2)
    ref2 = np.where(ref >= 0, ref, 0.01 * ref)
    np.testing.assert_allclose(np.asarray(y2), ref2, rtol=1e-5, atol=1e-5)

    print("KERNEL_OK")
</pallas_src>

<mosaic_0001>
module attributes {stable_mosaic.version = 11 : i64} {
  func.func @_dwconv_kernel(%arg0: i32, %arg1: memref<18x18x8xf32, #tpu.memory_space<vmem>>, %arg2: memref<9x8xf32, #tpu.memory_space<vmem>>, %arg3: memref<1x8xf32, #tpu.memory_space<vmem>>, %arg4: memref<16x16x8xf32, #tpu.memory_space<vmem>>) attributes {dimension_semantics = [#tpu.dimension_semantics<parallel>], iteration_bounds = array<i64: 1>, scalar_prefetch = 0 : i64, scratch_operands = 0 : i64, tpu.core_type = #tpu.core_type<tc>, window_params = [{transform_indices = @transform_0, window_bounds = array<i64: 18, 18, 8>}, {transform_indices = @transform_1, window_bounds = array<i64: 9, 8>}, {transform_indices = @transform_2, window_bounds = array<i64: 1, 8>}, {transform_indices = @transform_3, window_bounds = array<i64: 16, 16, 8>}]} {
    %cst = arith.constant 0.000000e+00 : f32
    %0 = vector.broadcast %cst : f32 to vector<16x16x8xf32>
    %c0 = arith.constant 0 : index
    %c0_0 = arith.constant 0 : index
    %c0_1 = arith.constant 0 : index
    %1 = vector.load %arg1[%c0, %c0_0, %c0_1] : memref<18x18x8xf32, #tpu.memory_space<vmem>>, vector<16x16x8xf32>
    %c0_2 = arith.constant 0 : index
    %c0_3 = arith.constant 0 : index
    %2 = vector.load %arg2[%c0_2, %c0_3] : memref<9x8xf32, #tpu.memory_space<vmem>>, vector<1x8xf32>
    %3 = vector.shape_cast %2 : vector<1x8xf32> to vector<8xf32>
    %4 = vector.shape_cast %3 : vector<8xf32> to vector<1x1x8xf32>
    %5 = vector.broadcast %4 : vector<1x1x8xf32> to vector<16x16x8xf32>
    %6 = arith.mulf %1, %5 : vector<16x16x8xf32>
    %7 = arith.addf %0, %6 : vector<16x16x8xf32>
    %c0_4 = arith.constant 0 : index
    %c1 = arith.constant 1 : index
    %c0_5 = arith.constant 0 : index
    %8 = vector.load %arg1[%c0_4, %c1, %c0_5] : memref<18x18x8xf32, #tpu.memory_space<vmem>>, vector<16x16x8xf32>
    %c1_6 = arith.constant 1 : index
    %c0_7 = arith.constant 0 : index
    %9 = vector.load %arg2[%c1_6, %c0_7] : memref<9x8xf32, #tpu.memory_space<vmem>>, vector<1x8xf32>
    %10 = vector.shape_cast %9 : vector<1x8xf32> to vector<8xf32>
    %11 = vector.shape_cast %10 : vector<8xf32> to vector<1x1x8xf32>
    %12 = vector.broadcast %11 : vector<1x1x8xf32> to vector<16x16x8xf32>
    %13 = arith.mulf %8, %12 : vector<16x16x8xf32>
    %14 = arith.addf %7, %13 : vector<16x16x8xf32>
    %c0_8 = arith.constant 0 : index
    %c2 = arith.constant 2 : index
    %c0_9 = arith.constant 0 : index
    %15 = vector.load %arg1[%c0_8, %c2, %c0_9] : memref<18x18x8xf32, #tpu.memory_space<vmem>>, vector<16x16x8xf32>
    %c2_10 = arith.constant 2 : index
    %c0_11 = arith.constant 0 : index
    %16 = vector.load %arg2[%c2_10, %c0_11] : memref<9x8xf32, #tpu.memory_space<vmem>>, vector<1x8xf32>
    %17 = vector.shape_cast %16 : vector<1x8xf32> to vector<8xf32>
    %18 = vector.shape_cast %17 : vector<8xf32> to vector<1x1x8xf32>
    %19 = vector.broadcast %18 : vector<1x1x8xf32> to vector<16x16x8xf32>
    %20 = arith.mulf %15, %19 : vector<16x16x8xf32>
    %21 = arith.addf %14, %20 : vector<16x16x8xf32>
    %c1_12 = arith.constant 1 : index
    %c0_13 = arith.constant 0 : index
    %c0_14 = arith.constant 0 : index
    %22 = vector.load %arg1[%c1_12, %c0_13, %c0_14] : memref<18x18x8xf32, #tpu.memory_space<vmem>>, vector<16x16x8xf32>
    %c3 = arith.constant 3 : index
    %c0_15 = arith.constant 0 : index
    %23 = vector.load %arg2[%c3, %c0_15] : memref<9x8xf32, #tpu.memory_space<vmem>>, vector<1x8xf32>
    %24 = vector.shape_cast %23 : vector<1x8xf32> to vector<8xf32>
    %25 = vector.shape_cast %24 : vector<8xf32> to vector<1x1x8xf32>
    %26 = vector.broadcast %25 : vector<1x1x8xf32> to vector<16x16x8xf32>
    %27 = arith.mulf %22, %26 : vector<16x16x8xf32>
    %28 = arith.addf %21, %27 : vector<16x16x8xf32>
    %c1_16 = arith.constant 1 : index
    %c1_17 = arith.constant 1 : index
    %c0_18 = arith.constant 0 : index
    %29 = vector.load %arg1[%c1_16, %c1_17, %c0_18] : memref<18x18x8xf32, #tpu.memory_space<vmem>>, vector<16x16x8xf32>
    %c4 = arith.constant 4 : index
    %c0_19 = arith.constant 0 : index
    %30 = vector.load %arg2[%c4, %c0_19] : memref<9x8xf32, #tpu.memory_space<vmem>>, vector<1x8xf32>
    %31 = vector.shape_cast %30 : vector<1x8xf32> to vector<8xf32>
    %32 = vector.shape_cast %31 : vector<8xf32> to vector<1x1x8xf32>
    %33 = vector.broadcast %32 : vector<1x1x8xf32> to vector<16x16x8xf32>
    %34 = arith.mulf %29, %33 : vector<16x16x8xf32>
    %35 = arith.addf %28, %34 : vector<16x16x8xf32>
    %c1_20 = arith.constant 1 : index
    %c2_21 = arith.constant 2 : index
    %c0_22 = arith.constant 0 : index
    %36 = vector.load %arg1[%c1_20, %c2_21, %c0_22] : memref<18x18x8xf32, #tpu.memory_space<vmem>>, vector<16x16x8xf32>
    %c5 = arith.constant 5 : index
    %c0_23 = arith.constant 0 : index
    %37 = vector.load %arg2[%c5, %c0_23] : memref<9x8xf32, #tpu.memory_space<vmem>>, vector<1x8xf32>
    %38 = vector.shape_cast %37 : vector<1x8xf32> to vector<8xf32>
    %39 = vector.shape_cast %38 : vector<8xf32> to vector<1x1x8xf32>
    %40 = vector.broadcast %39 : vector<1x1x8xf32> to vector<16x16x8xf32>
    %41 = arith.mulf %36, %40 : vector<16x16x8xf32>
    %42 = arith.addf %35, %41 : vector<16x16x8xf32>
    %c2_24 = arith.constant 2 : index
    %c0_25 = arith.constant 0 : index
    %c0_26 = arith.constant 0 : index
    %43 = vector.load %arg1[%c2_24, %c0_25, %c0_26] : memref<18x18x8xf32, #tpu.memory_space<vmem>>, vector<16x16x8xf32>
    %c6 = arith.constant 6 : index
    %c0_27 = arith.constant 0 : index
    %44 = vector.load %arg2[%c6, %c0_27] : memref<9x8xf32, #tpu.memory_space<vmem>>, vector<1x8xf32>
    %45 = vector.shape_cast %44 : vector<1x8xf32> to vector<8xf32>
    %46 = vector.shape_cast %45 : vector<8xf32> to vector<1x1x8xf32>
    %47 = vector.broadcast %46 : vector<1x1x8xf32> to vector<16x16x8xf32>
    %48 = arith.mulf %43, %47 : vector<16x16x8xf32>
    %49 = arith.addf %42, %48 : vector<16x16x8xf32>
    %c2_28 = arith.constant 2 : index
    %c1_29 = arith.constant 1 : index
    %c0_30 = arith.constant 0 : index
    %50 = vector.load %arg1[%c2_28, %c1_29, %c0_30] : memref<18x18x8xf32, #tpu.memory_space<vmem>>, vector<16x16x8xf32>
    %c7 = arith.constant 7 : index
    %c0_31 = arith.constant 0 : index
    %51 = vector.load %arg2[%c7, %c0_31] : memref<9x8xf32, #tpu.memory_space<vmem>>, vector<1x8xf32>
    %52 = vector.shape_cast %51 : vector<1x8xf32> to vector<8xf32>
    %53 = vector.shape_cast %52 : vector<8xf32> to vector<1x1x8xf32>
    %54 = vector.broadcast %53 : vector<1x1x8xf32> to vector<16x16x8xf32>
    %55 = arith.mulf %50, %54 : vector<16x16x8xf32>
    %56 = arith.addf %49, %55 : vector<16x16x8xf32>
    %c2_32 = arith.constant 2 : index
    %c2_33 = arith.constant 2 : index
    %c0_34 = arith.constant 0 : index
    %57 = vector.load %arg1[%c2_32, %c2_33, %c0_34] : memref<18x18x8xf32, #tpu.memory_space<vmem>>, vector<16x16x8xf32>
    %c8 = arith.constant 8 : index
    %c0_35 = arith.constant 0 : index
    %58 = vector.load %arg2[%c8, %c0_35] : memref<9x8xf32, #tpu.memory_space<vmem>>, vector<1x8xf32>
    %59 = vector.shape_cast %58 : vector<1x8xf32> to vector<8xf32>
    %60 = vector.shape_cast %59 : vector<8xf32> to vector<1x1x8xf32>
    %61 = vector.broadcast %60 : vector<1x1x8xf32> to vector<16x16x8xf32>
    %62 = arith.mulf %57, %61 : vector<16x16x8xf32>
    %63 = arith.addf %56, %62 : vector<16x16x8xf32>
    %c0_36 = arith.constant 0 : index
    %c0_37 = arith.constant 0 : index
    %64 = vector.load %arg3[%c0_36, %c0_37] : memref<1x8xf32, #tpu.memory_space<vmem>>, vector<1x8xf32>
    %65 = vector.shape_cast %64 : vector<1x8xf32> to vector<8xf32>
    %66 = vector.shape_cast %65 : vector<8xf32> to vector<1x1x8xf32>
    %67 = vector.broadcast %66 : vector<1x1x8xf32> to vector<16x16x8xf32>
    %68 = arith.addf %63, %67 : vector<16x16x8xf32>
    %c0_38 = arith.constant 0 : index
    %c0_39 = arith.constant 0 : index
    %c0_40 = arith.constant 0 : index
    %69 = vector.load %arg4[%c0_38, %c0_39, %c0_40] : memref<16x16x8xf32, #tpu.memory_space<vmem>>, vector<16x16x8xf32>
    tpu.vector_store %arg4[%c0_38, %c0_39, %c0_40], %68 {strides = array<i32>} : memref<16x16x8xf32, #tpu.memory_space<vmem>>, vector<16x16x8xf32>,
    return
  }
  func.func @transform_0(%arg0: i32) -> (i32, i32, i32) {
    %c0_i32 = arith.constant 0 : i32
    %c0_i32_0 = arith.constant 0 : i32
    %c0_i32_1 = arith.constant 0 : i32
    return %c0_i32, %c0_i32_0, %arg0 : i32, i32, i32
  }
  func.func @transform_1(%arg0: i32) -> (i32, i32) {
    %c0_i32 = arith.constant 0 : i32
    %c0_i32_0 = arith.constant 0 : i32
    return %c0_i32, %arg0 : i32, i32
  }
  func.func @transform_2(%arg0: i32) -> (i32, i32) {
    %c0_i32 = arith.constant 0 : i32
    %c0_i32_0 = arith.constant 0 : i32
    return %c0_i32, %arg0 : i32, i32
  }
  func.func @transform_3(%arg0: i32) -> (i32, i32, i32) {
    %c0_i32 = arith.constant 0 : i32
    %c0_i32_0 = arith.constant 0 : i32
    %c0_i32_1 = arith.constant 0 : i32
    return %c0_i32, %c0_i32_0, %arg0 : i32, i32, i32
  }
}

</mosaic_0001>

<llo_original>
// kernel: tpu_custom_call.1
$region0: #{tpu_custom_call.1}
  #allocation0 [shape = 'u32[]', space=smem, size = 0x4, offset = 0x4, fixed_abs, tag = 'smem constant byte address 0x4 - core index']
  #allocation1 [shape = 'u32[144,128]{1,0:T(1,128)}', space=vmem, size = 0x12000, scoped, tag = 'internal scratch']
  %s0 = inlined_call_operand.vmem [shape: f32[18,18,8], index: 0, kind: input, shape index: {}]
  %s1 = inlined_call_operand.vmem [shape: f32[9,8], index: 1, kind: input, shape index: {}]
  %s2 = inlined_call_operand.vmem [shape: f32[1,8], index: 2, kind: input, shape index: {}]
  %s3 = inlined_call_operand.vmem [shape: f32[16,16,8], index: 3, kind: output, shape index: {}]
  %s4 = sld [smem:[#allocation0]]
  $region22: #{tpu_custom_call.1} parent=0
    _
  %s6 = ssub.s32 1, %s4
  %s7 = scalar_select 0, %s6, %s4
  // Predicated region
  $region2: #{tpu_custom_call.1} parent=0 // pred_check
    _
  $region3: #{tpu_custom_call.1} parent=0 // pred_check_branch
    %9 = sbr.rel (0) target = $region5
  $region4: #{tpu_custom_call.1} parent=0 // pred_region
    _
  $region5: #{tpu_custom_call.1} parent=0 // pred_fallthru
    _
  // Predicated region
  $region6: #{tpu_custom_call.1} parent=0 // pred_check
    _
  $region7: #{tpu_custom_call.1} parent=0 // pred_check_branch
    %11 = sbr.rel (0) target = $region9
  $region8: #{tpu_custom_call.1} parent=0 // pred_region
    _
  $region9: #{tpu_custom_call.1} parent=0 // pred_fallthru
    _
  // Predicated region
  $region10: #{tpu_custom_call.1} parent=0 // pred_check
    _
  $region11: #{tpu_custom_call.1} parent=0 // pred_check_branch
    %13 = sbr.rel (0) target = $region13
  $region12: #{tpu_custom_call.1} parent=0 // pred_region
    _
  $region13: #{tpu_custom_call.1} parent=0 // pred_fallthru
    _
  %v14 = vld [vmem:[%s0] sm:$0xff]
  %v15 = vld [vmem:[%s0 + $0x8] sm:$0xff]
  %v16 = vld [vmem:[%s0 + $0x18] sm:$0xff]
  %v17 = vld [vmem:[%s0 + $0x20] sm:$0xff]
  %v18 = vld [vmem:[%s0 + $0x30] sm:$0xff]
  %v19 = vld [vmem:[%s0 + $0x38] sm:$0xff]
  %v20 = vld [vmem:[%s0 + $0x48] sm:$0xff]
  %v21 = vld [vmem:[%s0 + $0x50] sm:$0xff]
  %v22 = vld [vmem:[%s0 + $0x60] sm:$0xff]
  %v23 = vld [vmem:[%s0 + $0x68] sm:$0xff]
  %v24 = vld [vmem:[%s0 + $0x78] sm:$0xff]
  %v25 = vld [vmem:[%s0 + $0x80] sm:$0xff]
  %v26 = vld [vmem:[%s0 + $0x90] sm:$0xff]
  %v27 = vld [vmem:[%s0 + $0x98] sm:$0xff]
  %v28 = vld [vmem:[%s0 + $0xa8] sm:$0xff]
  %v29 = vld [vmem:[%s0 + $0xb0] sm:$0xff]
  %v30 = vld [vmem:[%s0 + $0xc0] sm:$0xff]
  %v31 = vld [vmem:[%s0 + $0xc8] sm:$0xff]
  %v32 = vld [vmem:[%s0 + $0xd8] sm:$0xff]
  %v33 = vld [vmem:[%s0 + $0xe0] sm:$0xff]
  %v34 = vld [vmem:[%s0 + $0xf0] sm:$0xff]
  %v35 = vld [vmem:[%s0 + $0xf8] sm:$0xff]
  %v36 = vld [vmem:[%s0 + $0x108] sm:$0xff]
  %v37 = vld [vmem:[%s0 + $0x110] sm:$0xff]
  %v38 = vld [vmem:[%s0 + $0x120] sm:$0xff]
  %v39 = vld [vmem:[%s0 + $0x128] sm:$0xff]
  %v40 = vld [vmem:[%s0 + $0x138] sm:$0xff]
  %v41 = vld [vmem:[%s0 + $0x140] sm:$0xff]
  %v42 = vld [vmem:[%s0 + $0x150] sm:$0xff]
  %v43 = vld [vmem:[%s0 + $0x158] sm:$0xff]
  %v44 = vld [vmem:[%s0 + $0x168] sm:$0xff]
  %v45 = vld [vmem:[%s0 + $0x170] sm:$0xff]
  %v46 = vld [vmem:[%s1] sm:$0x1]
  %v47 = vlaneseq
  %v48 = vshrl.u32 %v47, 7
  %v49 = vsub.s32 0, %v48
  %v50 = vrot.slane %v46, %v49
  %v51 = vmul.f32 %v14, %v50
  %v52 = vmul.f32 %v15, %v50
  %v53 = vmul.f32 %v16, %v50
  %v54 = vmul.f32 %v17, %v50
  %v55 = vmul.f32 %v18, %v50
  %v56 = vmul.f32 %v19, %v50
  %v57 = vmul.f32 %v20, %v50
  %v58 = vmul.f32 %v21, %v50
  %v59 = vmul.f32 %v22, %v50
  %v60 = vmul.f32 %v23, %v50
  %v61 = vmul.f32 %v24, %v50
  %v62 = vmul.f32 %v25, %v50
  %v63 = vmul.f32 %v26, %v50
  %v64 = vmul.f32 %v27, %v50
  %v65 = vmul.f32 %v28, %v50
  %v66 = vmul.f32 %v29, %v50
  %v67 = vmul.f32 %v30, %v50
  %v68 = vmul.f32 %v31, %v50
  %v69 = vmul.f32 %v32, %v50
  %v70 = vmul.f32 %v33, %v50
  %v71 = vmul.f32 %v34, %v50
  %v72 = vmul.f32 %v35, %v50
  %v73 = vmul.f32 %v36, %v50
  %v74 = vmul.f32 %v37, %v50
  %v75 = vmul.f32 %v38, %v50
  %v76 = vmul.f32 %v39, %v50
  %v77 = vmul.f32 %v40, %v50
  %v78 = vmul.f32 %v41, %v50
  %v79 = vmul.f32 %v42, %v50
  %v80 = vmul.f32 %v43, %v50
  %v81 = vmul.f32 %v44, %v50
  %v82 = vmul.f32 %v45, %v50
  %v83 = vadd.f32 %v51, 0.0
  %v84 = vadd.f32 %v52, 0.0
  %v85 = vadd.f32 %v53, 0.0
  %v86 = vadd.f32 %v54, 0.0
  %v87 = vadd.f32 %v55, 0.0
  %v88 = vadd.f32 %v56, 0.0
  %v89 = vadd.f32 %v57, 0.0
  %v90 = vadd.f32 %v58, 0.0
  %v91 = vadd.f32 %v59, 0.0
  %v92 = vadd.f32 %v60, 0.0
  %v93 = vadd.f32 %v61, 0.0
  %v94 = vadd.f32 %v62, 0.0
  %v95 = vadd.f32 %v63, 0.0
  %v96 = vadd.f32 %v64, 0.0
  %v97 = vadd.f32 %v65, 0.0
  %v98 = vadd.f32 %v66, 0.0
  %v99 = vadd.f32 %v67, 0.0
  %v100 = vadd.f32 %v68, 0.0
  %v101 = vadd.f32 %v69, 0.0
  %v102 = vadd.f32 %v70, 0.0
  %v103 = vadd.f32 %v71, 0.0
  %v104 = vadd.f32 %v72, 0.0
  %v105 = vadd.f32 %v73, 0.0
  %v106 = vadd.f32 %v74, 0.0
  %v107 = vadd.f32 %v75, 0.0
  %v108 = vadd.f32 %v76, 0.0
  %v109 = vadd.f32 %v77, 0.0
  %v110 = vadd.f32 %v78, 0.0
  %v111 = vadd.f32 %v79, 0.0
  %v112 = vadd.f32 %v80, 0.0
  %v113 = vadd.f32 %v81, 0.0
  %v114 = vadd.f32 %v82, 0.0
  %v115 = vld [vmem:[%s0 + $0x1] sm:$0xff]
  %v116 = vld [vmem:[%s0 + $0x9] sm:$0xff]
  %v117 = vld [vmem:[%s0 + $0x19] sm:$0xff]
  %v118 = vld [vmem:[%s0 + $0x21] sm:$0xff]
  %v119 = vld [vmem:[%s0 + $0x31] sm:$0xff]
  %v120 = vld [vmem:[%s0 + $0x39] sm:$0xff]
  %v121 = vld [vmem:[%s0 + $0x49] sm:$0xff]
  %v122 = vld [vmem:[%s0 + $0x51] sm:$0xff]
  %v123 = vld [vmem:[%s0 + $0x61] sm:$0xff]
  %v124 = vld [vmem:[%s0 + $0x69] sm:$0xff]
  %v125 = vld [vmem:[%s0 + $0x79] sm:$0xff]
  %v126 = vld [vmem:[%s0 + $0x81] sm:$0xff]
  %v127 = vld [vmem:[%s0 + $0x91] sm:$0xff]
  %v128 = vld [vmem:[%s0 + $0x99] sm:$0xff]
  %v129 = vld [vmem:[%s0 + $0xa9] sm:$0xff]
  %v130 = vld [vmem:[%s0 + $0xb1] sm:$0xff]
  %v131 = vld [vmem:[%s0 + $0xc1] sm:$0xff]
  %v132 = vld [vmem:[%s0 + $0xc9] sm:$0xff]
  %v133 = vld [vmem:[%s0 + $0xd9] sm:$0xff]
  %v134 = vld [vmem:[%s0 + $0xe1] sm:$0xff]
  %v135 = vld [vmem:[%s0 + $0xf1] sm:$0xff]
  %v136 = vld [vmem:[%s0 + $0xf9] sm:$0xff]
  %v137 = vld [vmem:[%s0 + $0x109] sm:$0xff]
  %v138 = vld [vmem:[%s0 + $0x111] sm:$0xff]
  %v139 = vld [vmem:[%s0 + $0x121] sm:$0xff]
  %v140 = vld [vmem:[%s0 + $0x129] sm:$0xff]
  %v141 = vld [vmem:[%s0 + $0x139] sm:$0xff]
  %v142 = vld [vmem:[%s0 + $0x141] sm:$0xff]
  %v143 = vld [vmem:[%s0 + $0x151] sm:$0xff]
  %v144 = vld [vmem:[%s0 + $0x159] sm:$0xff]
  %v145 = vld [vmem:[%s0 + $0x169] sm:$0xff]
  %v146 = vld [vmem:[%s0 + $0x171] sm:$0xff]
  %v147 = vld [vmem:[%s1 + $0x1] sm:$0x1]
  %v148 = vlaneseq
  %v149 = vshrl.u32 %v148, 7
  %v150 = vsub.s32 0, %v149
  %v151 = vrot.slane %v147, %v150
  %v152 = vmul.f32 %v115, %v151
  %v153 = vmul.f32 %v116, %v151
  %v154 = vmul.f32 %v117, %v151
  %v155 = vmul.f32 %v118, %v151
  %v156 = vmul.f32 %v119, %v151
  %v157 = vmul.f32 %v120, %v151
  %v158 = vmul.f32 %v121, %v151
  %v159 = vmul.f32 %v122, %v151
  %v160 = vmul.f32 %v123, %v151
  %v161 = vmul.f32 %v124, %v151
  %v162 = vmul.f32 %v125, %v151
  %v163 = vmul.f32 %v126, %v151
  %v164 = vmul.f32 %v127, %v151
  %v165 = vmul.f32 %v128, %v151
  %v166 = vmul.f32 %v129, %v151
  %v167 = vmul.f32 %v130, %v151
  %v168 = vmul.f32 %v131, %v151
  %v169 = vmul.f32 %v132, %v151
  %v170 = vmul.f32 %v133, %v151
  %v171 = vmul.f32 %v134, %v151
  %v172 = vmul.f32 %v135, %v151
  %v173 = vmul.f32 %v136, %v151
  %v174 = vmul.f32 %v137, %v151
  %v175 = vmul.f32 %v138, %v151
  %v176 = vmul.f32 %v139, %v151
  %v177 = vmul.f32 %v140, %v151
  %v178 = vmul.f32 %v141, %v151
  %v179 = vmul.f32 %v142, %v151
  %v180 = vmul.f32 %v143, %v151
  %v181 = vmul.f32 %v144, %v151
  %v182 = vmul.f32 %v145, %v151
  %v183 = vmul.f32 %v146, %v151
  %v184 = vadd.f32 %v83, %v152
  %v185 = vadd.f32 %v84, %v153
  %v186 = vadd.f32 %v85, %v154
  %v187 = vadd.f32 %v86, %v155
  %v188 = vadd.f32 %v87, %v156
  %v189 = vadd.f32 %v88, %v157
  %v190 = vadd.f32 %v89, %v158
  %v191 = vadd.f32 %v90, %v159
  %v192 = vadd.f32 %v91, %v160
  %v193 = vadd.f32 %v92, %v161
  %v194 = vadd.f32 %v93, %v162
  %v195 = vadd.f32 %v94, %v163
  %v196 = vadd.f32 %v95, %v164
  %v197 = vadd.f32 %v96, %v165
  %v198 = vadd.f32 %v97, %v166
  %v199 = vadd.f32 %v98, %v167
  %v200 = vadd.f32 %v99, %v168
  %v201 = vadd.f32 %v100, %v169
  %v202 = vadd.f32 %v101, %v170
  %v203 = vadd.f32 %v102, %v171
  %v204 = vadd.f32 %v103, %v172
  %v205 = vadd.f32 %v104, %v173
  %v206 = vadd.f32 %v105, %v174
  %v207 = vadd.f32 %v106, %v175
  %v208 = vadd.f32 %v107, %v176
  %v209 = vadd.f32 %v108, %v177
  %v210 = vadd.f32 %v109, %v178
  %v211 = vadd.f32 %v110, %v179
  %v212 = vadd.f32 %v111, %v180
  %v213 = vadd.f32 %v112, %v181
  %v214 = vadd.f32 %v113, %v182
  %v215 = vadd.f32 %v114, %v183
  %v216 = vld [vmem:[%s0 + $0x2] sm:$0xff]
  %v217 = vld [vmem:[%s0 + $0xa] sm:$0xff]
  %v218 = vld [vmem:[%s0 + $0x1a] sm:$0xff]
  %v219 = vld [vmem:[%s0 + $0x22] sm:$0xff]
  %v220 = vld [vmem:[%s0 + $0x32] sm:$0xff]
  %v221 = vld [vmem:[%s0 + $0x3a] sm:$0xff]
  %v222 = vld [vmem:[%s0 + $0x4a] sm:$0xff]
  %v223 = vld [vmem:[%s0 + $0x52] sm:$0xff]
  %v224 = vld [vmem:[%s0 + $0x62] sm:$0xff]
  %v225 = vld [vmem:[%s0 + $0x6a] sm:$0xff]
  %v226 = vld [vmem:[%s0 + $0x7a] sm:$0xff]
  %v227 = vld [vmem:[%s0 + $0x82] sm:$0xff]
  %v228 = vld [vmem:[%s0 + $0x92] sm:$0xff]
  %v229 = vld [vmem:[%s0 + $0x9a] sm:$0xff]
  %v230 = vld [vmem:[%s0 + $0xaa] sm:$0xff]
  %v231 = vld [vmem:[%s0 + $0xb2] sm:$0xff]
  %v232 = vld [vmem:[%s0 + $0xc2] sm:$0xff]
  %v233 = vld [vmem:[%s0 + $0xca] sm:$0xff]
  %v234 = vld [vmem:[%s0 + $0xda] sm:$0xff]
  %v235 = vld [vmem:[%s0 + $0xe2] sm:$0xff]
  %v236 = vld [vmem:[%s0 + $0xf2] sm:$0xff]
  %v237 = vld [vmem:[%s0 + $0xfa] sm:$0xff]
  %v238 = vld [vmem:[%s0 + $0x10a] sm:$0xff]
  %v239 = vld [vmem:[%s0 + $0x112] sm:$0xff]
  %v240 = vld [vmem:[%s0 + $0x122] sm:$0xff]
  %v241 = vld [vmem:[%s0 + $0x12a] sm:$0xff]
  %v242 = vld [vmem:[%s0 + $0x13a] sm:$0xff]
  %v243 = vld [vmem:[%s0 + $0x142] sm:$0xff]
  %v244 = vld [vmem:[%s0 + $0x152] sm:$0xff]
  %v245 = vld [vmem:[%s0 + $0x15a] sm:$0xff]
  %v246 = vld [vmem:[%s0 + $0x16a] sm:$0xff]
  %v247 = vld [vmem:[%s0 + $0x172] sm:$0xff]
  %v248 = vld [vmem:[%s1 + $0x2] sm:$0x1]
  %v249 = vlaneseq
  %v250 = vshrl.u32 %v249, 7
  %v251 = vsub.s32 0, %v250
  %v252 = vrot.slane %v248, %v251
  %v253 = vmul.f32 %v216, %v252
  %v254 = vmul.f32 %v217, %v252
  %v255 = vmul.f32 %v218, %v252
  %v256 = vmul.f32 %v219, %v252
  %v257 = vmul.f32 %v220, %v252
  %v258 = vmul.f32 %v221, %v252
  %v259 = vmul.f32 %v222, %v252
  %v260 = vmul.f32 %v223, %v252
  %v261 = vmul.f32 %v224, %v252
  %v262 = vmul.f32 %v225, %v252
  %v263 = vmul.f32 %v226, %v252
  %v264 = vmul.f32 %v227, %v252
  %v265 = vmul.f32 %v228, %v252
  %v266 = vmul.f32 %v229, %v252
  %v267 = vmul.f32 %v230, %v252
  %v268 = vmul.f32 %v231, %v252
  %v269 = vmul.f32 %v232, %v252
  %v270 = vmul.f32 %v233, %v252
  %v271 = vmul.f32 %v234, %v252
  %v272 = vmul.f32 %v235, %v252
  %v273 = vmul.f32 %v236, %v252
  %v274 = vmul.f32 %v237, %v252
  %v275 = vmul.f32 %v238, %v252
  %v276 = vmul.f32 %v239, %v252
  %v277 = vmul.f32 %v240, %v252
  %v278 = vmul.f32 %v241, %v252
  %v279 = vmul.f32 %v242, %v252
  %v280 = vmul.f32 %v243, %v252
  %v281 = vmul.f32 %v244, %v252
  %v282 = vmul.f32 %v245, %v252
  %v283 = vmul.f32 %v246, %v252
  %v284 = vmul.f32 %v247, %v252
  %v285 = vadd.f32 %v184, %v253
  %v286 = vadd.f32 %v185, %v254
  %v287 = vadd.f32 %v186, %v255
  %v288 = vadd.f32 %v187, %v256
  %v289 = vadd.f32 %v188, %v257
  %v290 = vadd.f32 %v189, %v258
  %v291 = vadd.f32 %v190, %v259
  %v292 = vadd.f32 %v191, %v260
  %v293 = vadd.f32 %v192, %v261
  %v294 = vadd.f32 %v193, %v262
  %v295 = vadd.f32 %v194, %v263
  %v296 = vadd.f32 %v195, %v264
  %v297 = vadd.f32 %v196, %v265
  %v298 = vadd.f32 %v197, %v266
  %v299 = vadd.f32 %v198, %v267
  %v300 = vadd.f32 %v199, %v268
  %v301 = vadd.f32 %v200, %v269
  %v302 = vadd.f32 %v201, %v270
  %v303 = vadd.f32 %v202, %v271
  %v304 = vadd.f32 %v203, %v272
  %v305 = vadd.f32 %v204, %v273
  %v306 = vadd.f32 %v205, %v274
  %v307 = vadd.f32 %v206, %v275
  %v308 = vadd.f32 %v207, %v276
  %v309 = vadd.f32 %v208, %v277
  %v310 = vadd.f32 %v209, %v278
  %v311 = vadd.f32 %v210, %v279
  %v312 = vadd.f32 %v211, %v280
  %v313 = vadd.f32 %v212, %v281
  %v314 = vadd.f32 %v213, %v282
  %v315 = vadd.f32 %v214, %v283
  %v316 = vadd.f32 %v215, %v284
  %s317 = scalar_lea.vmem %s0, 24
  %v318 = vld [vmem:[%s317] sm:$0xff]
  %v319 = vld [vmem:[%s317 + $0x8] sm:$0xff]
  %v320 = vld [vmem:[%s317 + $0x18] sm:$0xff]
  %v321 = vld [vmem:[%s317 + $0x20] sm:$0xff]
  %v322 = vld [vmem:[%s317 + $0x30] sm:$0xff]
  %v323 = vld [vmem:[%s317 + $0x38] sm:$0xff]
  %v324 = vld [vmem:[%s317 + $0x48] sm:$0xff]
  %v325 = vld [vmem:[%s317 + $0x50] sm:$0xff]
  %v326 = vld [vmem:[%s317 + $0x60] sm:$0xff]
  %v327 = vld [vmem:[%s317 + $0x68] sm:$0xff]
  %v328 = vld [vmem:[%s317 + $0x78] sm:$0xff]
  %v329 = vld [vmem:[%s317 + $0x80] sm:$0xff]
  %v330 = vld [vmem:[%s317 + $0x90] sm:$0xff]
  %v331 = vld [vmem:[%s317 + $0x98] sm:$0xff]
  %v332 = vld [vmem:[%s317 + $0xa8] sm:$0xff]
  %v333 = vld [vmem:[%s317 + $0xb0] sm:$0xff]
  %v334 = vld [vmem:[%s317 + $0xc0] sm:$0xff]
  %v335 = vld [vmem:[%s317 + $0xc8] sm:$0xff]
  %v336 = vld [vmem:[%s317 + $0xd8] sm:$0xff]
  %v337 = vld [vmem:[%s317 + $0xe0] sm:$0xff]
  %v338 = vld [vmem:[%s317 + $0xf0] sm:$0xff]
  %v339 = vld [vmem:[%s317 + $0xf8] sm:$0xff]
  %v340 = vld [vmem:[%s317 + $0x108] sm:$0xff]
  %v341 = vld [vmem:[%s317 + $0x110] sm:$0xff]
  %v342 = vld [vmem:[%s317 + $0x120] sm:$0xff]
  %v343 = vld [vmem:[%s317 + $0x128] sm:$0xff]
  %v344 = vld [vmem:[%s317 + $0x138] sm:$0xff]
  %v345 = vld [vmem:[%s317 + $0x140] sm:$0xff]
  %v346 = vld [vmem:[%s317 + $0x150] sm:$0xff]
  %v347 = vld [vmem:[%s317 + $0x158] sm:$0xff]
  %v348 = vld [vmem:[%s317 + $0x168] sm:$0xff]
  %v349 = vld [vmem:[%s317 + $0x170] sm:$0xff]
  %v350 = vld [vmem:[%s1 + $0x3] sm:$0x1]
  %v351 = vlaneseq
  %v352 = vshrl.u32 %v351, 7
  %v353 = vsub.s32 0, %v352
  %v354 = vrot.slane %v350, %v353
  %v355 = vmul.f32 %v318, %v354
  %v356 = vmul.f32 %v319, %v354
  %v357 = vmul.f32 %v320, %v354
  %v358 = vmul.f32 %v321, %v354
  %v359 = vmul.f32 %v322, %v354
  %v360 = vmul.f32 %v323, %v354
  %v361 = vmul.f32 %v324, %v354
  %v362 = vmul.f32 %v325, %v354
  %v363 = vmul.f32 %v326, %v354
  %v364 = vmul.f32 %v327, %v354
  %v365 = vmul.f32 %v328, %v354
  %v366 = vmul.f32 %v329, %v354
  %v367 = vmul.f32 %v330, %v354
  %v368 = vmul.f32 %v331, %v354
  %v369 = vmul.f32 %v332, %v354
  %v370 = vmul.f32 %v333, %v354
  %v371 = vmul.f32 %v334, %v354
  %v372 = vmul.f32 %v335, %v354
  %v373 = vmul.f32 %v336, %v354
  %v374 = vmul.f32 %v337, %v354
  %v375 = vmul.f32 %v338, %v354
  %v376 = vmul.f32 %v339, %v354
  %v377 = vmul.f32 %v340, %v354
  %v378 = vmul.f32 %v341, %v354
  %v379 = vmul.f32 %v342, %v354
  %v380 = vmul.f32 %v343, %v354
  %v381 = vmul.f32 %v344, %v354
  %v382 = vmul.f32 %v345, %v354
  %v383 = vmul.f32 %v346, %v354
  %v384 = vmul.f32 %v347, %v354
  %v385 = vmul.f32 %v348, %v354
  %v386 = vmul.f32 %v349, %v354
  %v387 = vadd.f32 %v285, %v355
  %v388 = vadd.f32 %v286, %v356
  %v389 = vadd.f32 %v287, %v357
  %v390 = vadd.f32 %v288, %v358
  %v391 = vadd.f32 %v289, %v359
  %v392 = vadd.f32 %v290, %v360
  %v393 = vadd.f32 %v291, %v361
  %v394 = vadd.f32 %v292, %v362
  %v395 = vadd.f32 %v293, %v363
  %v396 = vadd.f32 %v294, %v364
  %v397 = vadd.f32 %v295, %v365
  %v398 = vadd.f32 %v296, %v366
  %v399 = vadd.f32 %v297, %v367
  %v400 = vadd.f32 %v298, %v368
  %v401 = vadd.f32 %v299, %v369
  %v402 = vadd.f32 %v300, %v370
  %v403 = vadd.f32 %v301, %v371
  %v404 = vadd.f32 %v302, %v372
  %v405 = vadd.f32 %v303, %v373
  %v406 = vadd.f32 %v304, %v374
  %v407 = vadd.f32 %v305, %v375
  %v408 = vadd.f32 %v306, %v376
  %v409 = vadd.f32 %v307, %v377
  %v410 = vadd.f32 %v308, %v378
  %v411 = vadd.f32 %v309, %v379
  %v412 = vadd.f32 %v310, %v380
  %v413 = vadd.f32 %v311, %v381
  %v414 = vadd.f32 %v312, %v382
  %v415 = vadd.f32 %v313, %v383
  %v416 = vadd.f32 %v314, %v384
  %v417 = vadd.f32 %v315, %v385
  %v418 = vadd.f32 %v316, %v386
  %v419 = vld [vmem:[%s317 + $0x1] sm:$0xff]
  %v420 = vld [vmem:[%s317 + $0x9] sm:$0xff]
  %v421 = vld [vmem:[%s317 + $0x19] sm:$0xff]
  %v422 = vld [vmem:[%s317 + $0x21] sm:$0xff]
  %v423 = vld [vmem:[%s317 + $0x31] sm:$0xff]
  %v424 = vld [vmem:[%s317 + $0x39] sm:$0xff]
  %v425 = vld [vmem:[%s317 + $0x49] sm:$0xff]
  %v426 = vld [vmem:[%s317 + $0x51] sm:$0xff]
  %v427 = vld [vmem:[%s317 + $0x61] sm:$0xff]
  %v428 = vld [vmem:[%s317 + $0x69] sm:$0xff]
  %v429 = vld [vmem:[%s317 + $0x79] sm:$0xff]
  %v430 = vld [vmem:[%s317 + $0x81] sm:$0xff]
  %v431 = vld [vmem:[%s317 + $0x91] sm:$0xff]
  %v432 = vld [vmem:[%s317 + $0x99] sm:$0xff]
  %v433 = vld [vmem:[%s317 + $0xa9] sm:$0xff]
  %v434 = vld [vmem:[%s317 + $0xb1] sm:$0xff]
  %v435 = vld [vmem:[%s317 + $0xc1] sm:$0xff]
  %v436 = vld [vmem:[%s317 + $0xc9] sm:$0xff]
  %v437 = vld [vmem:[%s317 + $0xd9] sm:$0xff]
  %v438 = vld [vmem:[%s317 + $0xe1] sm:$0xff]
  %v439 = vld [vmem:[%s317 + $0xf1] sm:$0xff]
  %v440 = vld [vmem:[%s317 + $0xf9] sm:$0xff]
  %v441 = vld [vmem:[%s317 + $0x109] sm:$0xff]
  %v442 = vld [vmem:[%s317 + $0x111] sm:$0xff]
  %v443 = vld [vmem:[%s317 + $0x121] sm:$0xff]
  %v444 = vld [vmem:[%s317 + $0x129] sm:$0xff]
  %v445 = vld [vmem:[%s317 + $0x139] sm:$0xff]
  %v446 = vld [vmem:[%s317 + $0x141] sm:$0xff]
  %v447 = vld [vmem:[%s317 + $0x151] sm:$0xff]
  %v448 = vld [vmem:[%s317 + $0x159] sm:$0xff]
  %v449 = vld [vmem:[%s317 + $0x169] sm:$0xff]
  %v450 = vld [vmem:[%s317 + $0x171] sm:$0xff]
  %v451 = vld [vmem:[%s1 + $0x4] sm:$0x1]
  %v452 = vlaneseq
  %v453 = vshrl.u32 %v452, 7
  %v454 = vsub.s32 0, %v453
  %v455 = vrot.slane %v451, %v454
  %v456 = vmul.f32 %v419, %v455
  %v457 = vmul.f32 %v420, %v455
  %v458 = vmul.f32 %v421, %v455
  %v459 = vmul.f32 %v422, %v455
  %v460 = vmul.f32 %v423, %v455
  %v461 = vmul.f32 %v424, %v455
  %v462 = vmul.f32 %v425, %v455
  %v463 = vmul.f32 %v426, %v455
  %v464 = vmul.f32 %v427, %v455
  %v465 = vmul.f32 %v428, %v455
  %v466 = vmul.f32 %v429, %v455
  %v467 = vmul.f32 %v430, %v455
  %v468 = vmul.f32 %v431, %v455
  %v469 = vmul.f32 %v432, %v455
  %v470 = vmul.f32 %v433, %v455
  %v471 = vmul.f32 %v434, %v455
  %v472 = vmul.f32 %v435, %v455
  %v473 = vmul.f32 %v436, %v455
  %v474 = vmul.f32 %v437, %v455
  %v475 = vmul.f32 %v438, %v455
  %v476 = vmul.f32 %v439, %v455
  %v477 = vmul.f32 %v440, %v455
  %v478 = vmul.f32 %v441, %v455
  %v479 = vmul.f32 %v442, %v455
  %v480 = vmul.f32 %v443, %v455
  %v481 = vmul.f32 %v444, %v455
  %v482 = vmul.f32 %v445, %v455
  %v483 = vmul.f32 %v446, %v455
  %v484 = vmul.f32 %v447, %v455
  %v485 = vmul.f32 %v448, %v455
  %v486 = vmul.f32 %v449, %v455
  %v487 = vmul.f32 %v450, %v455
  %v488 = vadd.f32 %v387, %v456
  %v489 = vadd.f32 %v388, %v457
  %v490 = vadd.f32 %v389, %v458
  %v491 = vadd.f32 %v390, %v459
  %v492 = vadd.f32 %v391, %v460
  %v493 = vadd.f32 %v392, %v461
  %v494 = vadd.f32 %v393, %v462
  %v495 = vadd.f32 %v394, %v463
  %v496 = vadd.f32 %v395, %v464
  %v497 = vadd.f32 %v396, %v465
  %v498 = vadd.f32 %v397, %v466
  %v499 = vadd.f32 %v398, %v467
  %v500 = vadd.f32 %v399, %v468
  %v501 = vadd.f32 %v400, %v469
  %v502 = vadd.f32 %v401, %v470
  %v503 = vadd.f32 %v402, %v471
  %v504 = vadd.f32 %v403, %v472
  %v505 = vadd.f32 %v404, %v473
  %v506 = vadd.f32 %v405, %v474
  %v507 = vadd.f32 %v406, %v475
  %v508 = vadd.f32 %v407, %v476
  %v509 = vadd.f32 %v408, %v477
  %v510 = vadd.f32 %v409, %v478
  %v511 = vadd.f32 %v410, %v479
  %v512 = vadd.f32 %v411, %v480
  %v513 = vadd.f32 %v412, %v481
  %v514 = vadd.f32 %v413, %v482
  %v515 = vadd.f32 %v414, %v483
  %v516 = vadd.f32 %v415, %v484
  %v517 = vadd.f32 %v416, %v485
  %v518 = vadd.f32 %v417, %v486
  %v519 = vadd.f32 %v418, %v487
  %v520 = vld [vmem:[%s317 + $0x2] sm:$0xff]
  %v521 = vld [vmem:[%s317 + $0xa] sm:$0xff]
  %v522 = vld [vmem:[%s317 + $0x1a] sm:$0xff]
  %v523 = vld [vmem:[%s317 + $0x22] sm:$0xff]
  %v524 = vld [vmem:[%s317 + $0x32] sm:$0xff]
  %v525 = vld [vmem:[%s317 + $0x3a] sm:$0xff]
  %v526 = vld [vmem:[%s317 + $0x4a] sm:$0xff]
  %v527 = vld [vmem:[%s317 + $0x52] sm:$0xff]
  %v528 = vld [vmem:[%s317 + $0x62] sm:$0xff]
  %v529 = vld [vmem:[%s317 + $0x6a] sm:$0xff]
  %v530 = vld [vmem:[%s317 + $0x7a] sm:$0xff]
  %v531 = vld [vmem:[%s317 + $0x82] sm:$0xff]
  %v532 = vld [vmem:[%s317 + $0x92] sm:$0xff]
  %v533 = vld [vmem:[%s317 + $0x9a] sm:$0xff]
  %v534 = vld [vmem:[%s317 + $0xaa] sm:$0xff]
  %v535 = vld [vmem:[%s317 + $0xb2] sm:$0xff]
  %v536 = vld [vmem:[%s317 + $0xc2] sm:$0xff]
  %v537 = vld [vmem:[%s317 + $0xca] sm:$0xff]
  %v538 = vld [vmem:[%s317 + $0xda] sm:$0xff]
  %v539 = vld [vmem:[%s317 + $0xe2] sm:$0xff]
  %v540 = vld [vmem:[%s317 + $0xf2] sm:$0xff]
  %v541 = vld [vmem:[%s317 + $0xfa] sm:$0xff]
  %v542 = vld [vmem:[%s317 + $0x10a] sm:$0xff]
  %v543 = vld [vmem:[%s317 + $0x112] sm:$0xff]
  %v544 = vld [vmem:[%s317 + $0x122] sm:$0xff]
  %v545 = vld [vmem:[%s317 + $0x12a] sm:$0xff]
  %v546 = vld [vmem:[%s317 + $0x13a] sm:$0xff]
  %v547 = vld [vmem:[%s317 + $0x142] sm:$0xff]
  %v548 = vld [vmem:[%s317 + $0x152] sm:$0xff]
  %v549 = vld [vmem:[%s317 + $0x15a] sm:$0xff]
  %v550 = vld [vmem:[%s317 + $0x16a] sm:$0xff]
  %v551 = vld [vmem:[%s317 + $0x172] sm:$0xff]
  %v552 = vld [vmem:[%s1 + $0x5] sm:$0x1]
  %v553 = vlaneseq
  %v554 = vshrl.u32 %v553, 7
  %v555 = vsub.s32 0, %v554
  %v556 = vrot.slane %v552, %v555
  %v557 = vmul.f32 %v520, %v556
  %v558 = vmul.f32 %v521, %v556
  %v559 = vmul.f32 %v522, %v556
  %v560 = vmul.f32 %v523, %v556
  %v561 = vmul.f32 %v524, %v556
  %v562 = vmul.f32 %v525, %v556
  %v563 = vmul.f32 %v526, %v556
  %v564 = vmul.f32 %v527, %v556
  %v565 = vmul.f32 %v528, %v556
  %v566 = vmul.f32 %v529, %v556
  %v567 = vmul.f32 %v530, %v556
  %v568 = vmul.f32 %v531, %v556
  %v569 = vmul.f32 %v532, %v556
  %v570 = vmul.f32 %v533, %v556
  %v571 = vmul.f32 %v534, %v556
  %v572 = vmul.f32 %v535, %v556
  %v573 = vmul.f32 %v536, %v556
  %v574 = vmul.f32 %v537, %v556
  %v575 = vmul.f32 %v538, %v556
  %v576 = vmul.f32 %v539, %v556
  %v577 = vmul.f32 %v540, %v556
  %v578 = vmul.f32 %v541, %v556
  %v579 = vmul.f32 %v542, %v556
  %v580 = vmul.f32 %v543, %v556
  %v581 = vmul.f32 %v544, %v556
  %v582 = vmul.f32 %v545, %v556
  %v583 = vmul.f32 %v546, %v556
  %v584 = vmul.f32 %v547, %v556
  %v585 = vmul.f32 %v548, %v556
  %v586 = vmul.f32 %v549, %v556
  %v587 = vmul.f32 %v550, %v556
  %v588 = vmul.f32 %v551, %v556
  %v589 = vadd.f32 %v488, %v557
  %v590 = vadd.f32 %v489, %v558
  %v591 = vadd.f32 %v490, %v559
  %v592 = vadd.f32 %v491, %v560
  %v593 = vadd.f32 %v492, %v561
  %v594 = vadd.f32 %v493, %v562
  %v595 = vadd.f32 %v494, %v563
  %v596 = vadd.f32 %v495, %v564
  %v597 = vadd.f32 %v496, %v565
  %v598 = vadd.f32 %v497, %v566
  %v599 = vadd.f32 %v498, %v567
  %v600 = vadd.f32 %v499, %v568
  %v601 = vadd.f32 %v500, %v569
  %v602 = vadd.f32 %v501, %v570
  %v603 = vadd.f32 %v502, %v571
  %v604 = vadd.f32 %v503, %v572
  %v605 = vadd.f32 %v504, %v573
  %v606 = vadd.f32 %v505, %v574
  %v607 = vadd.f32 %v506, %v575
  %v608 = vadd.f32 %v507, %v576
  %v609 = vadd.f32 %v508, %v577
  %v610 = vadd.f32 %v509, %v578
  %v611 = vadd.f32 %v510, %v579
  %v612 = vadd.f32 %v511, %v580
  %v613 = vadd.f32 %v512, %v581
  %v614 = vadd.f32 %v513, %v582
  %v615 = vadd.f32 %v514, %v583
  %v616 = vadd.f32 %v515, %v584
  %v617 = vadd.f32 %v516, %v585
  %v618 = vadd.f32 %v517, %v586
  %v619 = vadd.f32 %v518, %v587
  %v620 = vadd.f32 %v519, %v588
  %s621 = scalar_lea.vmem %s0, 48
  %v622 = vld [vmem:[%s621] sm:$0xff]
  %v623 = vld [vmem:[%s621 + $0x8] sm:$0xff]
  %v624 = vld [vmem:[%s621 + $0x18] sm:$0xff]
  %v625 = vld [vmem:[%s621 + $0x20] sm:$0xff]
  %v626 = vld [vmem:[%s621 + $0x30] sm:$0xff]
  %v627 = vld [vmem:[%s621 + $0x38] sm:$0xff]
  %v628 = vld [vmem:[%s621 + $0x48] sm:$0xff]
  %v629 = vld [vmem:[%s621 + $0x50] sm:$0xff]
  %v630 = vld [vmem:[%s621 + $0x60] sm:$0xff]
  %v631 = vld [vmem:[%s621 + $0x68] sm:$0xff]
  %v632 = vld [vmem:[%s621 + $0x78] sm:$0xff]
  %v633 = vld [vmem:[%s621 + $0x80] sm:$0xff]
  %v634 = vld [vmem:[%s621 + $0x90] sm:$0xff]
  %v635 = vld [vmem:[%s621 + $0x98] sm:$0xff]
  %v636 = vld [vmem:[%s621 + $0xa8] sm:$0xff]
  %v637 = vld [vmem:[%s621 + $0xb0] sm:$0xff]
  %v638 = vld [vmem:[%s621 + $0xc0] sm:$0xff]
  %v639 = vld [vmem:[%s621 + $0xc8] sm:$0xff]
  %v640 = vld [vmem:[%s621 + $0xd8] sm:$0xff]
  %v641 = vld [vmem:[%s621 + $0xe0] sm:$0xff]
  %v642 = vld [vmem:[%s621 + $0xf0] sm:$0xff]
  %v643 = vld [vmem:[%s621 + $0xf8] sm:$0xff]
  %v644 = vld [vmem:[%s621 + $0x108] sm:$0xff]
  %v645 = vld [vmem:[%s621 + $0x110] sm:$0xff]
  %v646 = vld [vmem:[%s621 + $0x120] sm:$0xff]
  %v647 = vld [vmem:[%s621 + $0x128] sm:$0xff]
  %v648 = vld [vmem:[%s621 + $0x138] sm:$0xff]
  %v649 = vld [vmem:[%s621 + $0x140] sm:$0xff]
  %v650 = vld [vmem:[%s621 + $0x150] sm:$0xff]
  %v651 = vld [vmem:[%s621 + $0x158] sm:$0xff]
  %v652 = vld [vmem:[%s621 + $0x168] sm:$0xff]
  %v653 = vld [vmem:[%s621 + $0x170] sm:$0xff]
  %v654 = vld [vmem:[%s1 + $0x6] sm:$0x1]
  %v655 = vlaneseq
  %v656 = vshrl.u32 %v655, 7
  %v657 = vsub.s32 0, %v656
  %v658 = vrot.slane %v654, %v657
  %v659 = vmul.f32 %v622, %v658
  %v660 = vmul.f32 %v623, %v658
  %v661 = vmul.f32 %v624, %v658
  %v662 = vmul.f32 %v625, %v658
  %v663 = vmul.f32 %v626, %v658
  %v664 = vmul.f32 %v627, %v658
  %v665 = vmul.f32 %v628, %v658
  %v666 = vmul.f32 %v629, %v658
  %v667 = vmul.f32 %v630, %v658
  %v668 = vmul.f32 %v631, %v658
  %v669 = vmul.f32 %v632, %v658
  %v670 = vmul.f32 %v633, %v658
  %v671 = vmul.f32 %v634, %v658
  %v672 = vmul.f32 %v635, %v658
  %v673 = vmul.f32 %v636, %v658
  %v674 = vmul.f32 %v637, %v658
  %v675 = vmul.f32 %v638, %v658
  %v676 = vmul.f32 %v639, %v658
  %v677 = vmul.f32 %v640, %v658
  %v678 = vmul.f32 %v641, %v658
  %v679 = vmul.f32 %v642, %v658
  %v680 = vmul.f32 %v643, %v658
  %v681 = vmul.f32 %v644, %v658
  %v682 = vmul.f32 %v645, %v658
  %v683 = vmul.f32 %v646, %v658
  %v684 = vmul.f32 %v647, %v658
  %v685 = vmul.f32 %v648, %v658
  %v686 = vmul.f32 %v649, %v658
  %v687 = vmul.f32 %v650, %v658
  %v688 = vmul.f32 %v651, %v658
  %v689 = vmul.f32 %v652, %v658
  %v690 = vmul.f32 %v653, %v658
  %v691 = vadd.f32 %v589, %v659
  %v692 = vadd.f32 %v590, %v660
  %v693 = vadd.f32 %v591, %v661
  %v694 = vadd.f32 %v592, %v662
  %v695 = vadd.f32 %v593, %v663
  %v696 = vadd.f32 %v594, %v664
  %v697 = vadd.f32 %v595, %v665
  %v698 = vadd.f32 %v596, %v666
  %v699 = vadd.f32 %v597, %v667
  %v700 = vadd.f32 %v598, %v668
  %v701 = vadd.f32 %v599, %v669
  %v702 = vadd.f32 %v600, %v670
  %v703 = vadd.f32 %v601, %v671
  %v704 = vadd.f32 %v602, %v672
  %v705 = vadd.f32 %v603, %v673
  %v706 = vadd.f32 %v604, %v674
  %v707 = vadd.f32 %v605, %v675
  %v708 = vadd.f32 %v606, %v676
  %v709 = vadd.f32 %v607, %v677
  %v710 = vadd.f32 %v608, %v678
  %v711 = vadd.f32 %v609, %v679
  %v712 = vadd.f32 %v610, %v680
  %v713 = vadd.f32 %v611, %v681
  %v714 = vadd.f32 %v612, %v682
  %v715 = vadd.f32 %v613, %v683
  %v716 = vadd.f32 %v614, %v684
  %v717 = vadd.f32 %v615, %v685
  %v718 = vadd.f32 %v616, %v686
  %v719 = vadd.f32 %v617, %v687
  %v720 = vadd.f32 %v618, %v688
  %v721 = vadd.f32 %v619, %v689
  %v722 = vadd.f32 %v620, %v690
  %v723 = vld [vmem:[%s621 + $0x1] sm:$0xff]
  %v724 = vld [vmem:[%s621 + $0x9] sm:$0xff]
  %v725 = vld [vmem:[%s621 + $0x19] sm:$0xff]
  %v726 = vld [vmem:[%s621 + $0x21] sm:$0xff]
  %v727 = vld [vmem:[%s621 + $0x31] sm:$0xff]
  %v728 = vld [vmem:[%s621 + $0x39] sm:$0xff]
  %v729 = vld [vmem:[%s621 + $0x49] sm:$0xff]
  %v730 = vld [vmem:[%s621 + $0x51] sm:$0xff]
  %v731 = vld [vmem:[%s621 + $0x61] sm:$0xff]
  %v732 = vld [vmem:[%s621 + $0x69] sm:$0xff]
  %v733 = vld [vmem:[%s621 + $0x79] sm:$0xff]
  %v734 = vld [vmem:[%s621 + $0x81] sm:$0xff]
  %v735 = vld [vmem:[%s621 + $0x91] sm:$0xff]
  %v736 = vld [vmem:[%s621 + $0x99] sm:$0xff]
  %v737 = vld [vmem:[%s621 + $0xa9] sm:$0xff]
  %v738 = vld [vmem:[%s621 + $0xb1] sm:$0xff]
  %v739 = vld [vmem:[%s621 + $0xc1] sm:$0xff]
  %v740 = vld [vmem:[%s621 + $0xc9] sm:$0xff]
  %v741 = vld [vmem:[%s621 + $0xd9] sm:$0xff]
  %v742 = vld [vmem:[%s621 + $0xe1] sm:$0xff]
  %v743 = vld [vmem:[%s621 + $0xf1] sm:$0xff]
  %v744 = vld [vmem:[%s621 + $0xf9] sm:$0xff]
  %v745 = vld [vmem:[%s621 + $0x109] sm:$0xff]
  %v746 = vld [vmem:[%s621 + $0x111] sm:$0xff]
  %v747 = vld [vmem:[%s621 + $0x121] sm:$0xff]
  %v748 = vld [vmem:[%s621 + $0x129] sm:$0xff]
  %v749 = vld [vmem:[%s621 + $0x139] sm:$0xff]
  %v750 = vld [vmem:[%s621 + $0x141] sm:$0xff]
  %v751 = vld [vmem:[%s621 + $0x151] sm:$0xff]
  %v752 = vld [vmem:[%s621 + $0x159] sm:$0xff]
  %v753 = vld [vmem:[%s621 + $0x169] sm:$0xff]
  %v754 = vld [vmem:[%s621 + $0x171] sm:$0xff]
  %v755 = vld [vmem:[%s1 + $0x7] sm:$0x1]
  %v756 = vlaneseq
  %v757 = vshrl.u32 %v756, 7
  %v758 = vsub.s32 0, %v757
  %v759 = vrot.slane %v755, %v758
  %v760 = vmul.f32 %v723, %v759
  %v761 = vmul.f32 %v724, %v759
  %v762 = vmul.f32 %v725, %v759
  %v763 = vmul.f32 %v726, %v759
  %v764 = vmul.f32 %v727, %v759
  %v765 = vmul.f32 %v728, %v759
  %v766 = vmul.f32 %v729, %v759
  %v767 = vmul.f32 %v730, %v759
  %v768 = vmul.f32 %v731, %v759
  %v769 = vmul.f32 %v732, %v759
  %v770 = vmul.f32 %v733, %v759
  %v771 = vmul.f32 %v734, %v759
  %v772 = vmul.f32 %v735, %v759
  %v773 = vmul.f32 %v736, %v759
  %v774 = vmul.f32 %v737, %v759
  %v775 = vmul.f32 %v738, %v759
  %v776 = vmul.f32 %v739, %v759
  %v777 = vmul.f32 %v740, %v759
  %v778 = vmul.f32 %v741, %v759
  %v779 = vmul.f32 %v742, %v759
  %v780 = vmul.f32 %v743, %v759
  %v781 = vmul.f32 %v744, %v759
  %v782 = vmul.f32 %v745, %v759
  %v783 = vmul.f32 %v746, %v759
  %v784 = vmul.f32 %v747, %v759
  %v785 = vmul.f32 %v748, %v759
  %v786 = vmul.f32 %v749, %v759
  %v787 = vmul.f32 %v750, %v759
  %v788 = vmul.f32 %v751, %v759
  %v789 = vmul.f32 %v752, %v759
  %v790 = vmul.f32 %v753, %v759
  %v791 = vmul.f32 %v754, %v759
  %v792 = vadd.f32 %v691, %v760
  %v793 = vadd.f32 %v692, %v761
  %v794 = vadd.f32 %v693, %v762
  %v795 = vadd.f32 %v694, %v763
  %v796 = vadd.f32 %v695, %v764
  %v797 = vadd.f32 %v696, %v765
  %v798 = vadd.f32 %v697, %v766
  %v799 = vadd.f32 %v698, %v767
  %v800 = vadd.f32 %v699, %v768
  %v801 = vadd.f32 %v700, %v769
  %v802 = vadd.f32 %v701, %v770
  %v803 = vadd.f32 %v702, %v771
  %v804 = vadd.f32 %v703, %v772
  %v805 = vadd.f32 %v704, %v773
  %v806 = vadd.f32 %v705, %v774
  %v807 = vadd.f32 %v706, %v775
  %v808 = vadd.f32 %v707, %v776
  %v809 = vadd.f32 %v708, %v777
  %v810 = vadd.f32 %v709, %v778
  %v811 = vadd.f32 %v710, %v779
  %v812 = vadd.f32 %v711, %v780
  %v813 = vadd.f32 %v712, %v781
  %v814 = vadd.f32 %v713, %v782
  %v815 = vadd.f32 %v714, %v783
  %v816 = vadd.f32 %v715, %v784
  %v817 = vadd.f32 %v716, %v785
  %v818 = vadd.f32 %v717, %v786
  %v819 = vadd.f32 %v718, %v787
  %v820 = vadd.f32 %v719, %v788
  %v821 = vadd.f32 %v720, %v789
  %v822 = vadd.f32 %v721, %v790
  %v823 = vadd.f32 %v722, %v791
  %v824 = vld [vmem:[%s621 + $0x2] sm:$0xff]
  %v825 = vld [vmem:[%s621 + $0xa] sm:$0xff]
  %v826 = vld [vmem:[%s621 + $0x1a] sm:$0xff]
  %v827 = vld [vmem:[%s621 + $0x22] sm:$0xff]
  %v828 = vld [vmem:[%s621 + $0x32] sm:$0xff]
  %v829 = vld [vmem:[%s621 + $0x3a] sm:$0xff]
  %v830 = vld [vmem:[%s621 + $0x4a] sm:$0xff]
  %v831 = vld [vmem:[%s621 + $0x52] sm:$0xff]
  %v832 = vld [vmem:[%s621 + $0x62] sm:$0xff]
  %v833 = vld [vmem:[%s621 + $0x6a] sm:$0xff]
  %v834 = vld [vmem:[%s621 + $0x7a] sm:$0xff]
  %v835 = vld [vmem:[%s621 + $0x82] sm:$0xff]
  %v836 = vld [vmem:[%s621 + $0x92] sm:$0xff]
  %v837 = vld [vmem:[%s621 + $0x9a] sm:$0xff]
  %v838 = vld [vmem:[%s621 + $0xaa] sm:$0xff]
  %v839 = vld [vmem:[%s621 + $0xb2] sm:$0xff]
  %v840 = vld [vmem:[%s621 + $0xc2] sm:$0xff]
  %v841 = vld [vmem:[%s621 + $0xca] sm:$0xff]
  %v842 = vld [vmem:[%s621 + $0xda] sm:$0xff]
  %v843 = vld [vmem:[%s621 + $0xe2] sm:$0xff]
  %v844 = vld [vmem:[%s621 + $0xf2] sm:$0xff]
  %v845 = vld [vmem:[%s621 + $0xfa] sm:$0xff]
  %v846 = vld [vmem:[%s621 + $0x10a] sm:$0xff]
  %v847 = vld [vmem:[%s621 + $0x112] sm:$0xff]
  %v848 = vld [vmem:[%s621 + $0x122] sm:$0xff]
  %v849 = vld [vmem:[%s621 + $0x12a] sm:$0xff]
  %v850 = vld [vmem:[%s621 + $0x13a] sm:$0xff]
  %v851 = vld [vmem:[%s621 + $0x142] sm:$0xff]
  %v852 = vld [vmem:[%s621 + $0x152] sm:$0xff]
  %v853 = vld [vmem:[%s621 + $0x15a] sm:$0xff]
  %v854 = vld [vmem:[%s621 + $0x16a] sm:$0xff]
  %v855 = vld [vmem:[%s621 + $0x172] sm:$0xff]
  %v856 = vld [vmem:[%s1 + $0x8] sm:$0x1]
  %v857 = vlaneseq
  %v858 = vshrl.u32 %v857, 7
  %v859 = vsub.s32 0, %v858
  %v860 = vrot.slane %v856, %v859
  %v861 = vmul.f32 %v824, %v860
  %v862 = vmul.f32 %v825, %v860
  %v863 = vmul.f32 %v826, %v860
  %v864 = vmul.f32 %v827, %v860
  %v865 = vmul.f32 %v828, %v860
  %v866 = vmul.f32 %v829, %v860
  %v867 = vmul.f32 %v830, %v860
  %v868 = vmul.f32 %v831, %v860
  %v869 = vmul.f32 %v832, %v860
  %v870 = vmul.f32 %v833, %v860
  %v871 = vmul.f32 %v834, %v860
  %v872 = vmul.f32 %v835, %v860
  %v873 = vmul.f32 %v836, %v860
  %v874 = vmul.f32 %v837, %v860
  %v875 = vmul.f32 %v838, %v860
  %v876 = vmul.f32 %v839, %v860
  %v877 = vmul.f32 %v840, %v860
  %v878 = vmul.f32 %v841, %v860
  %v879 = vmul.f32 %v842, %v860
  %v880 = vmul.f32 %v843, %v860
  %v881 = vmul.f32 %v844, %v860
  %v882 = vmul.f32 %v845, %v860
  %v883 = vmul.f32 %v846, %v860
  %v884 = vmul.f32 %v847, %v860
  %v885 = vmul.f32 %v848, %v860
  %v886 = vmul.f32 %v849, %v860
  %v887 = vmul.f32 %v850, %v860
  %v888 = vmul.f32 %v851, %v860
  %v889 = vmul.f32 %v852, %v860
  %v890 = vmul.f32 %v853, %v860
  %v891 = vmul.f32 %v854, %v860
  %v892 = vmul.f32 %v855, %v860
  %v893 = vadd.f32 %v792, %v861
  %v894 = vadd.f32 %v793, %v862
  %v895 = vadd.f32 %v794, %v863
  %v896 = vadd.f32 %v795, %v864
  %v897 = vadd.f32 %v796, %v865
  %v898 = vadd.f32 %v797, %v866
  %v899 = vadd.f32 %v798, %v867
  %v900 = vadd.f32 %v799, %v868
  %v901 = vadd.f32 %v800, %v869
  %v902 = vadd.f32 %v801, %v870
  %v903 = vadd.f32 %v802, %v871
  %v904 = vadd.f32 %v803, %v872
  %v905 = vadd.f32 %v804, %v873
  %v906 = vadd.f32 %v805, %v874
  %v907 = vadd.f32 %v806, %v875
  %v908 = vadd.f32 %v807, %v876
  %v909 = vadd.f32 %v808, %v877
  %v910 = vadd.f32 %v809, %v878
  %v911 = vadd.f32 %v810, %v879
  %v912 = vadd.f32 %v811, %v880
  %v913 = vadd.f32 %v812, %v881
  %v914 = vadd.f32 %v813, %v882
  %v915 = vadd.f32 %v814, %v883
  %v916 = vadd.f32 %v815, %v884
  %v917 = vadd.f32 %v816, %v885
  %v918 = vadd.f32 %v817, %v886
  %v919 = vadd.f32 %v818, %v887
  %v920 = vadd.f32 %v819, %v888
  %v921 = vadd.f32 %v820, %v889
  %v922 = vadd.f32 %v821, %v890
  %v923 = vadd.f32 %v822, %v891
  %v924 = vadd.f32 %v823, %v892
  %v925 = vld [vmem:[%s2] sm:$0x1]
  %v927 = vlaneseq
  %v928 = vshrl.u32 %v927, 7
  %v929 = vsub.s32 0, %v928
  %v930 = vrot.slane %v925, %v929
  %v932 = vadd.f32 %v893, %v930
  %v933 = vadd.f32 %v894, %v930
  %v934 = vadd.f32 %v895, %v930
  %v935 = vadd.f32 %v896, %v930
  %v936 = vadd.f32 %v897, %v930
  %v937 = vadd.f32 %v898, %v930
  %v938 = vadd.f32 %v899, %v930
  %v939 = vadd.f32 %v900, %v930
  %v940 = vadd.f32 %v901, %v930
  %v941 = vadd.f32 %v902, %v930
  %v942 = vadd.f32 %v903, %v930
  %v943 = vadd.f32 %v904, %v930
  %v944 = vadd.f32 %v905, %v930
  %v945 = vadd.f32 %v906, %v930
  %v946 = vadd.f32 %v907, %v930
  %v947 = vadd.f32 %v908, %v930
  %v948 = vadd.f32 %v909, %v930
  %v949 = vadd.f32 %v910, %v930
  %v950 = vadd.f32 %v911, %v930
  %v951 = vadd.f32 %v912, %v930
  %v952 = vadd.f32 %v913, %v930
  %v953 = vadd.f32 %v914, %v930
  %v954 = vadd.f32 %v915, %v930
  %v955 = vadd.f32 %v916, %v930
  %v956 = vadd.f32 %v917, %v930
  %v957 = vadd.f32 %v918, %v930
  %v958 = vadd.f32 %v919, %v930
  %v959 = vadd.f32 %v920, %v930
  %v960 = vadd.f32 %v921, %v930
  %v961 = vadd.f32 %v922, %v930
  %v962 = vadd.f32 %v923, %v930
  %v963 = vadd.f32 %v924, %v930
  %vm964 = vcmask 64512
  %965 = vst.msk [vmem:[%s3] sm:$0xff] %vm964, %v932
  %966 = vst.msk [vmem:[%s3 + $0x8] sm:$0xff] %vm964, %v933
  %967 = vst.msk [vmem:[%s3 + $0x10] sm:$0xff] %vm964, %v934
  %968 = vst.msk [vmem:[%s3 + $0x18] sm:$0xff] %vm964, %v935
  %969 = vst.msk [vmem:[%s3 + $0x20] sm:$0xff] %vm964, %v936
  %970 = vst.msk [vmem:[%s3 + $0x28] sm:$0xff] %vm964, %v937
  %971 = vst.msk [vmem:[%s3 + $0x30] sm:$0xff] %vm964, %v938
  %972 = vst.msk [vmem:[%s3 + $0x38] sm:$0xff] %vm964, %v939
  %973 = vst.msk [vmem:[%s3 + $0x40] sm:$0xff] %vm964, %v940
  %974 = vst.msk [vmem:[%s3 + $0x48] sm:$0xff] %vm964, %v941
  %975 = vst.msk [vmem:[%s3 + $0x50] sm:$0xff] %vm964, %v942
  %976 = vst.msk [vmem:[%s3 + $0x58] sm:$0xff] %vm964, %v943
  %977 = vst.msk [vmem:[%s3 + $0x60] sm:$0xff] %vm964, %v944
  %978 = vst.msk [vmem:[%s3 + $0x68] sm:$0xff] %vm964, %v945
  %979 = vst.msk [vmem:[%s3 + $0x70] sm:$0xff] %vm964, %v946
  %980 = vst.msk [vmem:[%s3 + $0x78] sm:$0xff] %vm964, %v947
  %981 = vst.msk [vmem:[%s3 + $0x80] sm:$0xff] %vm964, %v948
  %982 = vst.msk [vmem:[%s3 + $0x88] sm:$0xff] %vm964, %v949
  %983 = vst.msk [vmem:[%s3 + $0x90] sm:$0xff] %vm964, %v950
  %984 = vst.msk [vmem:[%s3 + $0x98] sm:$0xff] %vm964, %v951
  %985 = vst.msk [vmem:[%s3 + $0xa0] sm:$0xff] %vm964, %v952
  %986 = vst.msk [vmem:[%s3 + $0xa8] sm:$0xff] %vm964, %v953
  %987 = vst.msk [vmem:[%s3 + $0xb0] sm:$0xff] %vm964, %v954
  %988 = vst.msk [vmem:[%s3 + $0xb8] sm:$0xff] %vm964, %v955
  %989 = vst.msk [vmem:[%s3 + $0xc0] sm:$0xff] %vm964, %v956
  %990 = vst.msk [vmem:[%s3 + $0xc8] sm:$0xff] %vm964, %v957
  %991 = vst.msk [vmem:[%s3 + $0xd0] sm:$0xff] %vm964, %v958
  %992 = vst.msk [vmem:[%s3 + $0xd8] sm:$0xff] %vm964, %v959
  %993 = vst.msk [vmem:[%s3 + $0xe0] sm:$0xff] %vm964, %v960
  %994 = vst.msk [vmem:[%s3 + $0xe8] sm:$0xff] %vm964, %v961
  %995 = vst.msk [vmem:[%s3 + $0xf0] sm:$0xff] %vm964, %v962
  %996 = vst.msk [vmem:[%s3 + $0xf8] sm:$0xff] %vm964, %v963
  // Predicated region
  $region14: #{tpu_custom_call.1} parent=0 // pred_check
    _
  $region15: #{tpu_custom_call.1} parent=0 // pred_check_branch
    %998 = sbr.rel (0) target = $region17
  $region16: #{tpu_custom_call.1} parent=0 // pred_region
    _
  $region17: #{tpu_custom_call.1} parent=0 // pred_fallthru
    _
  // Predicated region
  $region18: #{tpu_custom_call.1} parent=0 // pred_check
    _
  $region19: #{tpu_custom_call.1} parent=0 // pred_check_branch
    %1000 = sbr.rel (0) target = $region21
  $region20: #{tpu_custom_call.1} parent=0 // pred_region
    _
  $region21: #{tpu_custom_call.1} parent=0 // pred_fallthru
    _

</llo_original>
